<compile_context>
chip_gen: v6e
topology: v6e:2x2x1
jax: 0.10.0
libtpu: 0.0.40
codegen_flags: <defaults>
</compile_context>

<pallas_src>
import jax
import jax.numpy as jnp
from jax.experimental import pallas as pl
from jax.experimental.pallas import tpu as pltpu


def _round_up(x, m):
    return ((x + m - 1) // m) * m


# ---------------------------------------------------------------------------
# Kernels
# ---------------------------------------------------------------------------
def _matmul_single_k_kernel(lhs_ref, rhs_ref, o_ref):
    """Whole reduction resident in one K slab: no accumulator scratch needed."""
    o_ref[...] = jnp.dot(
        lhs_ref[...], rhs_ref[...], preferred_element_type=jnp.float32
    ).astype(o_ref.dtype)


def _matmul_acc_kernel(lhs_ref, rhs_ref, o_ref, acc_ref):
    """General tiled matmul; f32 accumulator over the trailing K grid axis."""
    @pl.when(pl.program_id(2) == 0)
    def _():
        acc_ref[...] = jnp.zeros_like(acc_ref)

    acc_ref[...] += jnp.dot(
        lhs_ref[...], rhs_ref[...], preferred_element_type=jnp.float32
    )

    @pl.when(pl.program_id(2) == pl.num_programs(2) - 1)
    def _():
        o_ref[...] = acc_ref[...].astype(o_ref.dtype)


# ---------------------------------------------------------------------------
# Waste-aware, VMEM-budgeted tile selection
# ---------------------------------------------------------------------------
def _choose_tiles(m, k, n, in_itemsize, out_itemsize, vmem_budget):
    m_full = _round_up(m, 16)
    k_full = _round_up(k, 128)
    n_full = _round_up(n, 128)

    def waste_pick(dim, full, cands, cap):
        # Cover the whole (aligned) dim with one tile when it is small enough;
        # otherwise pick the candidate with least round-up waste (ties -> larger).
        if full <= cap:
            return full
        cands = [c for c in cands if c <= cap]
        return min(cands, key=lambda t: (_round_up(dim, t) - dim, -t))

    tk = waste_pick(k, k_full, (1024, 896, 768, 640, 512, 384, 256, 128), 2048)
    tn = waste_pick(n, n_full, (1024, 896, 768, 640, 512, 384, 256, 128), 2048)
    tm = waste_pick(m, m_full, (512, 384, 256, 128, 64, 32, 16), 512)

    def footprint(tm_, tn_, tk_):
        single_k = tk_ >= k_full
        return ((2 * tm_ * tk_ + 2 * tk_ * tn_) * in_itemsize   # dbl-buffered inputs
                + 2 * tm_ * tn_ * out_itemsize                  # dbl-buffered output
                + (0 if single_k else tm_ * tn_ * 4))            # f32 accumulator

    # Shrink (M first, then K, then N) until the working set fits the budget.
    while footprint(tm, tn, tk) > vmem_budget:
        if tm > 128:
            tm = max(128, _round_up(tm // 2, 16))
        elif tk > 512:
            tk = max(512, _round_up(tk // 2, 128))
        elif tn > 256:
            tn = max(256, _round_up(tn // 2, 128))
        elif tm > 16:
            tm = max(16, _round_up(tm // 2, 16))
        elif tk > 128:
            tk = max(128, _round_up(tk // 2, 128))
        elif tn > 128:
            tn = max(128, _round_up(tn // 2, 128))
        else:
            break

    # v7x has two TensorCores; when the whole problem fits one block, split it
    # so both cores get a "parallel" block (only if halves stay lane-dense).
    if _round_up(m, tm) // tm == 1 and _round_up(n, tn) // tn == 1:
        if tn >= 512 and tn % 256 == 0:
            tn //= 2
        elif tm >= 256 and tm % 32 == 0:
            tm //= 2

    return tm, tn, tk


# ---------------------------------------------------------------------------
# Pallas matmul wrapper (MXU matmul, f32 accumulate, padding for odd shapes)
# ---------------------------------------------------------------------------
def _pallas_matmul(lhs, rhs, out_dtype=jnp.float32, *, vmem_budget=14 * (1 << 20)):
    m, k = lhs.shape
    k2, n = rhs.shape
    assert k == k2

    in_itemsize = jnp.dtype(lhs.dtype).itemsize
    out_itemsize = jnp.dtype(out_dtype).itemsize

    tm, tn, tk = _choose_tiles(m, k, n, in_itemsize, out_itemsize, vmem_budget)

    m_p = _round_up(m, tm)
    n_p = _round_up(n, tn)
    k_p = _round_up(k, tk)

    # Zero padding (applied to BOTH operands along K so padded K contributes 0).
    if (m_p, k_p) != (m, k):
        lhs = jnp.pad(lhs, ((0, m_p - m), (0, k_p - k)))
    if (k_p, n_p) != (k, n):
        rhs = jnp.pad(rhs, ((0, k_p - k), (0, n_p - n)))

    cost = pl.CostEstimate(
        flops=2 * m_p * k_p * n_p,
        transcendentals=0,
        bytes_accessed=(m_p * k_p + k_p * n_p) * in_itemsize + m_p * n_p * out_itemsize,
    )

    compiler_kwargs = {}
    if vmem_budget > 14 * (1 << 20):
        # Big-tile configs (e.g. v6e) need the scoped VMEM limit raised.
        compiler_kwargs["vmem_limit_bytes"] = int(vmem_budget * 3 // 2)

    if k_p == tk:
        # Fast path: whole reduction in one slab -> no accumulator scratch,
        # `rhs` (source embeddings) streamed from HBM once per column block.
        out = pl.pallas_call(
            _matmul_single_k_kernel,
            out_shape=jax.ShapeDtypeStruct((m_p, n_p), out_dtype),
            grid_spec=pltpu.PrefetchScalarGridSpec(
                num_scalar_prefetch=0,
                grid=(m_p // tm, n_p // tn),
                in_specs=[
                    pl.BlockSpec((tm, tk), lambda i, j: (i, 0)),
                    pl.BlockSpec((tk, tn), lambda i, j: (0, j)),
                ],
                out_specs=pl.BlockSpec((tm, tn), lambda i, j: (i, j)),
            ),
            compiler_params=pltpu.CompilerParams(
                dimension_semantics=("parallel", "parallel"), **compiler_kwargs
            ),
            cost_estimate=cost,
        )(lhs, rhs)
    else:
        # General path: reduction axis innermost, f32 accumulator scratch.
        out = pl.pallas_call(
            _matmul_acc_kernel,
            out_shape=jax.ShapeDtypeStruct((m_p, n_p), out_dtype),
            grid_spec=pltpu.PrefetchScalarGridSpec(
                num_scalar_prefetch=0,
                grid=(m_p // tm, n_p // tn, k_p // tk),
                in_specs=[
                    pl.BlockSpec((tm, tk), lambda i, j, kk: (i, kk)),
                    pl.BlockSpec((tk, tn), lambda i, j, kk: (kk, j)),
                ],
                out_specs=pl.BlockSpec((tm, tn), lambda i, j, kk: (i, j)),
                scratch_shapes=[pltpu.VMEM((tm, tn), jnp.float32)],
            ),
            compiler_params=pltpu.CompilerParams(
                dimension_semantics=("parallel", "parallel", "arbitrary"),
                **compiler_kwargs,
            ),
            cost_estimate=cost,
        )(lhs, rhs)

    if (m_p, n_p) != (m, n):
        out = out[:m, :n]
    return out


# ---------------------------------------------------------------------------
# Forward pass
# ---------------------------------------------------------------------------
def mapped_embedding_forward(token_ids, coeff, source, *, use_bf16=True,
                             out_dtype=jnp.float32):
    """out = (coeff @ source)[token_ids].

    use_bf16=True runs the MXU contraction in bf16 with f32 accumulation
    (PyTorch reference is pure f32; set use_bf16=False for exact-precision
    matmul inputs).
    """
    token_dim, v_src = coeff.shape
    v_src2, emb_dim = source.shape
    assert v_src == v_src2

    flat_ids = token_ids.reshape(-1)
    n_tok = flat_ids.shape[0]

    compute_dtype = jnp.bfloat16 if use_bf16 else coeff.dtype
    # Cast BEFORE any gather/pad so those passes move 2-byte elements and the
    # kernel never touches an f32 copy of the operands.
    coeff_c = coeff.astype(compute_dtype)
    source_c = source.astype(compute_dtype)

    if n_tok >= token_dim:
        # Long sequences: building the whole (T, D) table is LESS matmul work
        # than multiplying B*S gathered rows, and the gather then only moves
        # B*S*D bytes (of the small result) instead of B*S*V bytes.
        table = _pallas_matmul(coeff_c, source_c, out_dtype)        # (T, D)
        out = jnp.take(table, flat_ids, axis=0)                     # (B*S, D)
    else:
        # Short sequences: gather only the needed coefficient rows (bf16),
        # then multiply.  Algebraically identical to gathering output rows.
        # NOTE: jnp.take clamps out-of-range ids; PyTorch indexing would raise.
        lhs = jnp.take(coeff_c, flat_ids, axis=0)                   # (B*S, V)
        out = _pallas_matmul(lhs, source_c, out_dtype)              # (B*S, D)

    return out.reshape(token_ids.shape + (emb_dim,))


if __name__ == "__main__":
    # Small, deterministic example shapes.
    token_dim = 64     # target vocabulary size
    src_vocab = 128    # source_embeddings.shape[0]
    emb_dim = 128      # source_embeddings.shape[1]
    batch, seq = 2, 8  # token_ids shape

    key = jax.random.PRNGKey(0)
    k_coeff, k_src, k_ids, k_ids2 = jax.random.split(key, 4)

    # nn.Parameter(torch.rand(token_dim, src_vocab)) -> uniform [0, 1)
    coeff = jax.random.uniform(k_coeff, (token_dim, src_vocab), dtype=jnp.float32)
    # source_embeddings: fixed (requires_grad=False) embedding table
    source = jax.random.normal(k_src, (src_vocab, emb_dim), dtype=jnp.float32)
    token_ids = jax.random.randint(k_ids, (batch, seq), 0, token_dim, dtype=jnp.int32)

    fwd = jax.jit(mapped_embedding_forward)

    # --- Path 1: B*S < token_dim -> gather-first branch -------------------
    out = jax.block_until_ready(fwd(token_ids, coeff, source))
    assert out.shape == (batch, seq, emb_dim), out.shape

    # Reference in the same precision regime as the kernel (bf16 MXU, f32 acc).
    ref_bf16 = jnp.take(
        jnp.dot(coeff.astype(jnp.bfloat16), source.astype(jnp.bfloat16),
                preferred_element_type=jnp.float32),
        token_ids, axis=0)
    assert jnp.allclose(out, ref_bf16, atol=1e-2, rtol=1e-2), (
        float(jnp.max(jnp.abs(out - ref_bf16))))

    # Loose check against exact f32 math (difference = bf16 input rounding only).
    ref_f32 = jnp.take(coeff @ source, token_ids, axis=0)
    assert jnp.allclose(out, ref_f32, atol=0.25, rtol=0.05), (
        float(jnp.max(jnp.abs(out - ref_f32))))

    # --- Path 2: B*S >= token_dim -> table-first branch --------------------
    long_seq = 64
    token_ids_long = jax.random.randint(
        k_ids2, (batch, long_seq), 0, token_dim, dtype=jnp.int32)
    out_long = jax.block_until_ready(fwd(token_ids_long, coeff, source))
    assert out_long.shape == (batch, long_seq, emb_dim), out_long.shape
    ref_long = jnp.take(
        jnp.dot(coeff.astype(jnp.bfloat16), source.astype(jnp.bfloat16),
                preferred_element_type=jnp.float32),
        token_ids_long, axis=0)
    assert jnp.allclose(out_long, ref_long, atol=1e-2, rtol=1e-2), (
        float(jnp.max(jnp.abs(out_long - ref_long))))

    print("KERNEL_OK")
</pallas_src>

<mosaic_0001>
module attributes {stable_mosaic.version = 11 : i64} {
  func.func @_matmul_single_k_kernel(%arg0: i32, %arg1: i32, %arg2: memref<16x128xbf16, #tpu.memory_space<vmem>>, %arg3: memref<128x128xbf16, #tpu.memory_space<vmem>>, %arg4: memref<16x128xf32, #tpu.memory_space<vmem>>) attributes {dimension_semantics = [#tpu.dimension_semantics<parallel>, #tpu.dimension_semantics<parallel>], iteration_bounds = array<i64: 1, 1>, scalar_prefetch = 0 : i64, scratch_operands = 0 : i64, tpu.core_type = #tpu.core_type<tc>, window_params = [{transform_indices = @transform_0, window_bounds = array<i64: 16, 128>}, {transform_indices = @transform_1, window_bounds = array<i64: 128, 128>}, {transform_indices = @transform_2, window_bounds = array<i64: 16, 128>}]} {
    %c0 = arith.constant 0 : index
    %c0_0 = arith.constant 0 : index
    %0 = vector.load %arg2[%c0, %c0_0] : memref<16x128xbf16, #tpu.memory_space<vmem>>, vector<16x128xbf16>
    %c0_1 = arith.constant 0 : index
    %c0_2 = arith.constant 0 : index
    %1 = vector.load %arg3[%c0_1, %c0_2] : memref<128x128xbf16, #tpu.memory_space<vmem>>, vector<128x128xbf16>
    %cst = arith.constant dense<0.000000e+00> : vector<16x128xf32>
    %2 = tpu.matmul %0, %1, %cst {dimension_numbers = #tpu.dot_dimension_numbers<[1], [0], [0], [1], [0, 0, 1, 1], [], []>} : vector<16x128xbf16>, vector<128x128xbf16>, vector<16x128xf32> -> vector<16x128xf32>
    %c0_3 = arith.constant 0 : index
    %c0_4 = arith.constant 0 : index
    %3 = vector.load %arg4[%c0_3, %c0_4] : memref<16x128xf32, #tpu.memory_space<vmem>>, vector<16x128xf32>
    tpu.vector_store %arg4[%c0_3, %c0_4], %2 {strides = array<i32>} : memref<16x128xf32, #tpu.memory_space<vmem>>, vector<16x128xf32>,
    return
  }
  func.func @transform_0(%arg0: i32, %arg1: i32) -> (i32, i32) {
    %c0_i32 = arith.constant 0 : i32
    %c0_i32_0 = arith.constant 0 : i32
    return %arg0, %c0_i32 : i32, i32
  }
  func.func @transform_1(%arg0: i32, %arg1: i32) -> (i32, i32) {
    %c0_i32 = arith.constant 0 : i32
    %c0_i32_0 = arith.constant 0 : i32
    return %c0_i32, %arg1 : i32, i32
  }
  func.func @transform_2(%arg0: i32, %arg1: i32) -> (i32, i32) {
    %c0_i32 = arith.constant 0 : i32
    return %arg0, %arg1 : i32, i32
  }
}

</mosaic_0001>

<llo_original>
// kernel: mapped_embedding_forward.1
$region0: #{mapped_embedding_forward.1}
  #allocation0 [shape = 'u32[]', space=smem, size = 0x4, offset = 0x4, fixed_abs, tag = 'smem constant byte address 0x4 - core index']
  #allocation1 [shape = 'u32[144,128]{1,0:T(1,128)}', space=vmem, size = 0x12000, scoped, tag = 'internal scratch']
  %s0 = inlined_call_operand.vmem [shape: bf16[16,128], index: 0, kind: input, shape index: {}]
  %s1 = inlined_call_operand.vmem [shape: bf16[128,128], index: 1, kind: input, shape index: {}]
  %s2 = inlined_call_operand.hbm [shape: f32[16,128], index: 2, kind: output, shape index: {}]
  %s3 = sld [smem:[#allocation0]]
  $region18: #{mapped_embedding_forward.1} parent=0
    _
  %s5 = ssub.s32 1, %s3
  %s6 = scalar_select 0, %s5, %s3
  $region1: #{mapped_embedding_forward.1} parent=0
    #allocation2 [shape = 'u8[8192]{0}', space=vmem, size = 0x2000, scoped, tag = 'output window, operand 0, single buffered']
    #allocation3 [shape = 's32[1]{0}', space=sflag, size = 0x4, scoped, tag = 'scoped memory for mapped_embedding_forward.1']
    %7 = vsyncpa [#allocation3], 0
    // Predicated region
    $region2: #{mapped_embedding_forward.1} parent=1 // pred_check
      _
    $region3: #{mapped_embedding_forward.1} parent=1 // pred_check_branch
      %9 = sbr.rel (0) target = $region5
    $region4: #{mapped_embedding_forward.1} parent=1 // pred_region
      _
    $region5: #{mapped_embedding_forward.1} parent=1 // pred_fallthru
      _
    // Predicated region
    $region6: #{mapped_embedding_forward.1} parent=1 // pred_check
      _
    $region7: #{mapped_embedding_forward.1} parent=1 // pred_check_branch
      %11 = sbr.rel (0) target = $region9
    $region8: #{mapped_embedding_forward.1} parent=1 // pred_region
      _
    $region9: #{mapped_embedding_forward.1} parent=1 // pred_fallthru
      _
    %v13 = vld [vmem:[%s0] sm:$0xf]
    %v14 = vld [vmem:[%s0 + $0x4] sm:$0xf]
    %v15 = vld [vmem:[%s1] sm:$0xf]
    %v16 = vld [vmem:[%s1 + $0x4] sm:$0xf]
    %v17 = vld [vmem:[%s1 + $0x8] sm:$0xf]
    %v18 = vld [vmem:[%s1 + $0xc] sm:$0xf]
    %v19 = vld [vmem:[%s1 + $0x10] sm:$0xf]
    %v20 = vld [vmem:[%s1 + $0x14] sm:$0xf]
    %v21 = vld [vmem:[%s1 + $0x18] sm:$0xf]
    %v22 = vld [vmem:[%s1 + $0x1c] sm:$0xf]
    %v23 = vld [vmem:[%s1 + $0x20] sm:$0xf]
    %v24 = vld [vmem:[%s1 + $0x24] sm:$0xf]
    %v25 = vld [vmem:[%s1 + $0x28] sm:$0xf]
    %v26 = vld [vmem:[%s1 + $0x2c] sm:$0xf]
    %v27 = vld [vmem:[%s1 + $0x30] sm:$0xf]
    %v28 = vld [vmem:[%s1 + $0x34] sm:$0xf]
    %v29 = vld [vmem:[%s1 + $0x38] sm:$0xf]
    %v30 = vld [vmem:[%s1 + $0x3c] sm:$0xf]
    %v33 = vunpack.c.l.b16 %v13
    %v34 = vunpack.c.l.b16 %v14
    %v35 = vpack.c.b16 %v34, %v33
    %v53 = vunpack.c.l.b16 %v15
    %v54 = vunpack.c.l.b16 %v16
    %v55 = vunpack.c.l.b16 %v17
    %v56 = vunpack.c.l.b16 %v18
    %v57 = vunpack.c.l.b16 %v19
    %v58 = vunpack.c.l.b16 %v20
    %v59 = vunpack.c.l.b16 %v21
    %v60 = vunpack.c.l.b16 %v22
    %v61 = vunpack.c.l.b16 %v23
    %v62 = vunpack.c.l.b16 %v24
    %v63 = vunpack.c.l.b16 %v25
    %v64 = vunpack.c.l.b16 %v26
    %v65 = vunpack.c.l.b16 %v27
    %v66 = vunpack.c.l.b16 %v28
    %v67 = vunpack.c.l.b16 %v29
    %v68 = vunpack.c.l.b16 %v30
    %v69 = vpack.c.b16 %v54, %v53
    %v70 = vpack.c.b16 %v56, %v55
    %v71 = vpack.c.b16 %v58, %v57
    %v72 = vpack.c.b16 %v60, %v59
    %v73 = vpack.c.b16 %v62, %v61
    %v74 = vpack.c.b16 %v64, %v63
    %v75 = vpack.c.b16 %v66, %v65
    %v76 = vpack.c.b16 %v68, %v67
    %85 = vmatprep.subr.bf16.mxu0 0
    %86 = vmatpush1.bf16.msra.mxu0 %v76
    %87 = vmatprep.subr.bf16.mxu0 0
    %88 = vmatpush1.bf16.msra.mxu0 %v75
    %89 = vmatprep.subr.bf16.mxu0 0
    %90 = vmatpush1.bf16.msra.mxu0 %v74
    %91 = vmatprep.subr.bf16.mxu0 0
    %92 = vmatpush1.bf16.msra.mxu0 %v73
    %93 = vmatprep.subr.bf16.mxu0 0
    %94 = vmatpush1.bf16.msra.mxu0 %v72
    %95 = vmatprep.subr.bf16.mxu0 0
    %96 = vmatpush1.bf16.msra.mxu0 %v71
    %97 = vmatprep.subr.bf16.mxu0 0
    %98 = vmatpush1.bf16.msra.mxu0 %v70
    %99 = vmatprep.subr.bf16.mxu0 0
    %100 = vmatpush1.bf16.msra.mxu0 %v69
    %101 = vmatprep.subr.bf16.mxu0 0
    %102 = vmatpush2.bf16.msra.mxu0 0
    %103 = vmatprep.subr.bf16.mxu0 0
    %104 = vmatpush2.bf16.msra.mxu0 0
    %105 = vmatprep.subr.bf16.mxu0 0
    %106 = vmatpush2.bf16.msra.mxu0 0
    %107 = vmatprep.subr.bf16.mxu0 0
    %108 = vmatpush2.bf16.msra.mxu0 0
    %109 = vmatprep.subr.bf16.mxu0 0
    %110 = vmatpush2.bf16.msra.mxu0 0
    %111 = vmatprep.subr.bf16.mxu0 0
    %112 = vmatpush2.bf16.msra.mxu0 0
    %113 = vmatprep.subr.bf16.mxu0 0
    %114 = vmatpush2.bf16.msra.mxu0 0
    %115 = vmatprep.subr.bf16.mxu0 0
    %116 = vmatpush2.bf16.msra.mxu0 0
    %117 = vmatprep.mubr.bf16.mxu0 0
    %118 = vmatmul.mubr.bf16.gmra.mxu0 %v35
    %v119 = vpop.f32.mrf.mxu0
    %v120 = vadd.f32 0.0, %v119
    %v121 = vpop.f32.mrf.mxu0
    %v122 = vpop.f32.mrf.mxu0
    %v123 = vadd.f32 0.0, %v122
    %v124 = vpop.f32.mrf.mxu0
    %125 = vdwg.mxu0
    %126 = vst [vmem:[#allocation2] sm:$0xff] %v120
    %127 = vst [vmem:[#allocation2 + $0x8] sm:$0xff] %v123
    // Predicated region
    $region10: #{mapped_embedding_forward.1} parent=1 // pred_check
      _
    $region11: #{mapped_embedding_forward.1} parent=1 // pred_check_branch
      %129 = sbr.rel (0) target = $region13
    $region12: #{mapped_embedding_forward.1} parent=1 // pred_region
      %s131 = ssub.s32 256, 256
      %132 = vsyncadd [#allocation3], %s131
      %s133 = sshll.u32 [#allocation2], 4
      %s134 = int_to_ptr.vmem [resolvable:$true] %s133
      %139 = dma.vmem_to_hbm [thread:$0]  %s134, 256, %s2, [#allocation3], 128, 128, 8
    $region13: #{mapped_embedding_forward.1} parent=1 // pred_fallthru
      _
    // Predicated region
    $region14: #{mapped_embedding_forward.1} parent=1 // pred_check
      _
    $region15: #{mapped_embedding_forward.1} parent=1 // pred_check_branch
      %141 = sbr.rel (0) target = $region17
    $region16: #{mapped_embedding_forward.1} parent=1 // pred_region
      %142 = dma.done [#allocation3], 256
    $region17: #{mapped_embedding_forward.1} parent=1 // pred_fallthru
      _
    %143 = vsyncpa [#allocation3], 1

</llo_original>
